<compile_context>
chip_gen: v5e
topology: v5e:2x2
jax: 0.10.0
libtpu: 0.0.40
codegen_flags: <defaults>
</compile_context>

<pallas_src>
import functools

import jax
import jax.numpy as jnp
from jax.experimental import pallas as pl
from jax.experimental.pallas import tpu as pltpu


def _round_up(x, m):
    return (x + m - 1) // m * m


def _mlp_kernel(n_layers, d_out, x_ref, w_ref, b_ref, o_ref):
    """Transposed MLP: activations are [features, batch_tile] (batch on lanes).

    x_ref : (D, tile_m)      zero-padded, transposed input block
    w_ref : (L, D, D)        zero-padded weights, PyTorch (out, in) layout
    b_ref : (L, D, 1)        zero-padded biases
    o_ref : (d_out, tile_m)  lane-dense output block
    """
    h = x_ref[...].astype(jnp.float32)                        # (D, tile_m)
    for l in range(n_layers):                                 # unrolled (static)
        w = w_ref[l].astype(jnp.float32)                      # (D, D)
        b = b_ref[l].astype(jnp.float32)                      # (D, 1) -> lane bcast
        h = jnp.dot(w, h, preferred_element_type=jnp.float32) + b
        if l < n_layers - 1:                                  # tanh on all but last
            h = jnp.tanh(h)                                   # EUP slot
    # Lane-dense store: d_out rows x tile_m lanes (tile_m % 128 == 0).
    o_ref[...] = h[:d_out, :].astype(o_ref.dtype)


def pinn_forward(x, params, *, tile_m=256):
    """PINN MLP forward pass with a Pallas TPU kernel.

    x:      [N, d_in]  (any N; padded internally to a multiple of the tile)
    params: list of (W [out, in], b [out]) per Linear layer (PyTorch layout).
    """
    N, d_in = x.shape
    n_layers = len(params)
    assert n_layers >= 1
    dims = [d_in] + [W.shape[0] for W, _ in params]
    d_out = dims[-1]
    D = _round_up(max(dims), 8)                     # common padded feature width

    # Batch tile: lane-dense (multiple of 128), large enough to amortize the
    # per-grid-step overhead, single step for tiny batches.
    tile = min(_round_up(tile_m, 128), _round_up(N, 128))
    N_pad = _round_up(N, tile)
    grid = (N_pad // tile,)

    # Pack every layer into one zero-padded weight stack + one bias stack.
    W_stack = jnp.stack([
        jnp.pad(W.astype(jnp.float32), ((0, D - W.shape[0]), (0, D - W.shape[1])))
        for W, _ in params])                                   # (L, D, D)
    b_stack = jnp.stack([
        jnp.pad(b.astype(jnp.float32), (0, D - b.shape[0]))[:, None]
        for _, b in params])                                   # (L, D, 1)

    # Transposed, zero-padded input: features on sublanes, batch on lanes.
    xT = jnp.pad(jnp.transpose(x), ((0, D - d_in), (0, N_pad - N)))

    flops = 2 * N_pad * sum(dims[i] * dims[i + 1] for i in range(n_layers))
    transcendentals = N_pad * sum(dims[1:-1])
    bytes_accessed = (xT.size + d_out * N_pad + W_stack.size + b_stack.size) * 4

    kernel = functools.partial(_mlp_kernel, n_layers, d_out)

    outT = pl.pallas_call(
        kernel,
        out_shape=jax.ShapeDtypeStruct((d_out, N_pad), x.dtype),
        grid=grid,
        in_specs=[
            pl.BlockSpec((D, tile), lambda i: (0, i)),             # x tile
            pl.BlockSpec((n_layers, D, D), lambda i: (0, 0, 0)),   # weights (resident)
            pl.BlockSpec((n_layers, D, 1), lambda i: (0, 0, 0)),   # biases  (resident)
        ],
        out_specs=pl.BlockSpec((d_out, tile), lambda i: (0, i)),
        compiler_params=pltpu.CompilerParams(
            dimension_semantics=("parallel",)),
        cost_estimate=pl.CostEstimate(
            flops=int(flops),
            transcendentals=int(transcendentals),
            bytes_accessed=int(bytes_accessed)),
    )(xT, W_stack, b_stack)

    return jnp.transpose(outT)[:N]                  # (N, d_out)


def init_pinn_params(key, layers):
    """PyTorch nn.Linear-style init: U(-1/sqrt(fan_in), 1/sqrt(fan_in)), (out, in) layout."""
    params = []
    for i in range(len(layers) - 1):
        fan_in, fan_out = layers[i], layers[i + 1]
        key, kw, kb = jax.random.split(key, 3)
        bound = 1.0 / float(fan_in) ** 0.5
        W = jax.random.uniform(kw, (fan_out, fan_in), jnp.float32,
                               minval=-bound, maxval=bound)
        b = jax.random.uniform(kb, (fan_out,), jnp.float32,
                               minval=-bound, maxval=bound)
        params.append((W, b))
    return params


def pinn_forward_ref(x, params):
    """Pure-JAX reference matching the PyTorch forward (Tanh activation)."""
    h = x.astype(jnp.float32)
    for i, (W, b) in enumerate(params):
        h = h @ W.T + b
        if i < len(params) - 1:
            h = jnp.tanh(h)
    return h.astype(x.dtype)


if __name__ == "__main__":
    # PINN(layers=[4, 32, 32, 1], activation_function=nn.Tanh)
    layers = [4, 32, 32, 1]

    key = jax.random.PRNGKey(0)
    key, kp = jax.random.split(key)
    params = init_pinn_params(kp, layers)

    # Small batch (single grid step) and a larger, non-multiple batch
    # (exercises grid > 1, zero-padding of the last tile, both v7x cores).
    for batch in (32, 384):
        key, kx = jax.random.split(key)
        x = jax.random.normal(kx, (batch, layers[0]), jnp.float32)

        out = jax.block_until_ready(pinn_forward(x, params))
        ref = pinn_forward_ref(x, params)

        assert out.shape == (batch, layers[-1])
        assert jnp.allclose(out, ref, atol=1e-4, rtol=1e-4), "mismatch vs reference"

    # TODO(synk): ff=True (GaussianEncoding random Fourier features) and
    # hard_constraint_fn are external callables not defined in the module;
    # only the default MLP path is implemented here.
    print("KERNEL_OK")
</pallas_src>

<mosaic_0001>
module attributes {stable_mosaic.version = 11 : i64} {
  func.func @_mlp_kernel(%arg0: i32, %arg1: memref<32x128xf32, #tpu.memory_space<vmem>>, %arg2: memref<3x32x32xf32, #tpu.memory_space<vmem>>, %arg3: memref<3x32x1xf32, #tpu.memory_space<vmem>>, %arg4: memref<1x128xf32, #tpu.memory_space<vmem>>) attributes {dimension_semantics = [#tpu.dimension_semantics<parallel>], iteration_bounds = array<i64: 1>, scalar_prefetch = 0 : i64, scratch_operands = 0 : i64, tpu.core_type = #tpu.core_type<tc>, window_params = [{transform_indices = @transform_0, window_bounds = array<i64: 32, 128>}, {pipeline_mode = #tpu.pipeline_mode<synchronous>, transform_indices = @transform_1, window_bounds = array<i64: 3, 32, 32>}, {pipeline_mode = #tpu.pipeline_mode<synchronous>, transform_indices = @transform_2, window_bounds = array<i64: 3, 32, 1>}, {transform_indices = @transform_3, window_bounds = array<i64: 1, 128>}]} {
    %c0 = arith.constant 0 : index
    %c0_0 = arith.constant 0 : index
    %0 = vector.load %arg1[%c0, %c0_0] : memref<32x128xf32, #tpu.memory_space<vmem>>, vector<32x128xf32>
    %c0_1 = arith.constant 0 : index
    %c0_2 = arith.constant 0 : index
    %c0_3 = arith.constant 0 : index
    %1 = vector.load %arg2[%c0_1, %c0_2, %c0_3] : memref<3x32x32xf32, #tpu.memory_space<vmem>>, vector<1x32x32xf32>
    %2 = vector.shape_cast %1 : vector<1x32x32xf32> to vector<32x32xf32>
    %c0_4 = arith.constant 0 : index
    %c0_5 = arith.constant 0 : index
    %c0_6 = arith.constant 0 : index
    %3 = vector.load %arg3[%c0_4, %c0_5, %c0_6] : memref<3x32x1xf32, #tpu.memory_space<vmem>>, vector<1x32x1xf32>
    %4 = vector.shape_cast %3 : vector<1x32x1xf32> to vector<32x1xf32>
    %cst = arith.constant dense<0.000000e+00> : vector<32x128xf32>
    %5 = tpu.matmul %2, %0, %cst {dimension_numbers = #tpu.dot_dimension_numbers<[1], [0], [0], [1], [0, 0, 1, 1], [], []>} : vector<32x32xf32>, vector<32x128xf32>, vector<32x128xf32> -> vector<32x128xf32>
    %6 = vector.broadcast %4 : vector<32x1xf32> to vector<32x128xf32>
    %7 = arith.addf %5, %6 : vector<32x128xf32>
    %8 = math.tanh %7 : vector<32x128xf32>
    %c1 = arith.constant 1 : index
    %c0_7 = arith.constant 0 : index
    %c0_8 = arith.constant 0 : index
    %9 = vector.load %arg2[%c1, %c0_7, %c0_8] : memref<3x32x32xf32, #tpu.memory_space<vmem>>, vector<1x32x32xf32>
    %10 = vector.shape_cast %9 : vector<1x32x32xf32> to vector<32x32xf32>
    %c1_9 = arith.constant 1 : index
    %c0_10 = arith.constant 0 : index
    %c0_11 = arith.constant 0 : index
    %11 = vector.load %arg3[%c1_9, %c0_10, %c0_11] : memref<3x32x1xf32, #tpu.memory_space<vmem>>, vector<1x32x1xf32>
    %12 = vector.shape_cast %11 : vector<1x32x1xf32> to vector<32x1xf32>
    %cst_12 = arith.constant dense<0.000000e+00> : vector<32x128xf32>
    %13 = tpu.matmul %10, %8, %cst_12 {dimension_numbers = #tpu.dot_dimension_numbers<[1], [0], [0], [1], [0, 0, 1, 1], [], []>} : vector<32x32xf32>, vector<32x128xf32>, vector<32x128xf32> -> vector<32x128xf32>
    %14 = vector.broadcast %12 : vector<32x1xf32> to vector<32x128xf32>
    %15 = arith.addf %13, %14 : vector<32x128xf32>
    %16 = math.tanh %15 : vector<32x128xf32>
    %c2 = arith.constant 2 : index
    %c0_13 = arith.constant 0 : index
    %c0_14 = arith.constant 0 : index
    %17 = vector.load %arg2[%c2, %c0_13, %c0_14] : memref<3x32x32xf32, #tpu.memory_space<vmem>>, vector<1x32x32xf32>
    %18 = vector.shape_cast %17 : vector<1x32x32xf32> to vector<32x32xf32>
    %c2_15 = arith.constant 2 : index
    %c0_16 = arith.constant 0 : index
    %c0_17 = arith.constant 0 : index
    %19 = vector.load %arg3[%c2_15, %c0_16, %c0_17] : memref<3x32x1xf32, #tpu.memory_space<vmem>>, vector<1x32x1xf32>
    %20 = vector.shape_cast %19 : vector<1x32x1xf32> to vector<32x1xf32>
    %cst_18 = arith.constant dense<0.000000e+00> : vector<32x128xf32>
    %21 = tpu.matmul %18, %16, %cst_18 {dimension_numbers = #tpu.dot_dimension_numbers<[1], [0], [0], [1], [0, 0, 1, 1], [], []>} : vector<32x32xf32>, vector<32x128xf32>, vector<32x128xf32> -> vector<32x128xf32>
    %22 = vector.broadcast %20 : vector<32x1xf32> to vector<32x128xf32>
    %23 = arith.addf %21, %22 : vector<32x128xf32>
    %24 = vector.extract_strided_slice %23 {offsets = [0, 0], sizes = [1, 128], strides = [1, 1]} : vector<32x128xf32> to vector<1x128xf32>
    %c0_19 = arith.constant 0 : index
    %c0_20 = arith.constant 0 : index
    %25 = vector.load %arg4[%c0_19, %c0_20] : memref<1x128xf32, #tpu.memory_space<vmem>>, vector<1x128xf32>
    tpu.vector_store %arg4[%c0_19, %c0_20], %24 {strides = array<i32>} : memref<1x128xf32, #tpu.memory_space<vmem>>, vector<1x128xf32>,
    return
  }
  func.func @transform_0(%arg0: i32) -> (i32, i32) {
    %c0_i32 = arith.constant 0 : i32
    %c0_i32_0 = arith.constant 0 : i32
    return %c0_i32, %arg0 : i32, i32
  }
  func.func @transform_1(%arg0: i32) -> (i32, i32, i32) {
    %c0_i32 = arith.constant 0 : i32
    %c0_i32_0 = arith.constant 0 : i32
    %c0_i32_1 = arith.constant 0 : i32
    %c0_i32_2 = arith.constant 0 : i32
    return %c0_i32, %c0_i32_0, %c0_i32_1 : i32, i32, i32
  }
  func.func @transform_2(%arg0: i32) -> (i32, i32, i32) {
    %c0_i32 = arith.constant 0 : i32
    %c0_i32_0 = arith.constant 0 : i32
    %c0_i32_1 = arith.constant 0 : i32
    %c0_i32_2 = arith.constant 0 : i32
    return %c0_i32, %c0_i32_0, %c0_i32_1 : i32, i32, i32
  }
  func.func @transform_3(%arg0: i32) -> (i32, i32) {
    %c0_i32 = arith.constant 0 : i32
    %c0_i32_0 = arith.constant 0 : i32
    return %c0_i32, %arg0 : i32, i32
  }
}

</mosaic_0001>

<llo_original>
// kernel: tpu_custom_call.1
$region0: #{tpu_custom_call.1}
  #allocation0 [shape = 'u32[]', space=smem, size = 0x4, offset = 0x4, fixed_abs, tag = 'smem constant byte address 0x4 - core index']
  #allocation1 [shape = 'u32[72,128]{1,0:T(1,128)}', space=vmem, size = 0x9000, scoped, tag = 'internal scratch']
  %s0 = inlined_call_operand.hbm [shape: f32[32,128], index: 0, kind: input, shape index: {}]
  %s1 = inlined_call_operand.vmem [shape: f32[3,32,32], index: 1, kind: input, shape index: {}]
  %s2 = inlined_call_operand.vmem [shape: f32[3,32,1], index: 2, kind: input, shape index: {}]
  %s3 = inlined_call_operand.hbm [shape: f32[1,128], index: 3, kind: output, shape index: {}]
  %s4 = sld [smem:[#allocation0]]
  $region26: #{tpu_custom_call.1} parent=0
    _
  %s6 = ssub.s32 1, %s4
  %s7 = scalar_select 0, %s6, %s4
  $region1: #{tpu_custom_call.1} parent=0
    #allocation2 [shape = 'u8[16384]{0}', space=vmem, size = 0x4000, scoped, tag = 'input window, operand 0, single buffered']
    #allocation3 [shape = 's32[1]{0}', space=sflag, size = 0x4, scoped, tag = 'scoped memory for tpu_custom_call.1']
    #allocation4 [shape = 's32[1]{0}', space=sflag, size = 0x4, scoped, tag = 'scoped memory for tpu_custom_call.1']
    #allocation5 [shape = 'u8[512]{0}', space=vmem, size = 0x400, scoped, tag = 'output window, operand 0, single buffered']
    %8 = vsyncpa [#allocation3], 0
    %9 = vsyncpa [#allocation4], 0
    // Predicated region
    $region2: #{tpu_custom_call.1} parent=1 // pred_check
      _
    $region3: #{tpu_custom_call.1} parent=1 // pred_check_branch
      %11 = sbr.rel (0) target = $region5
    $region4: #{tpu_custom_call.1} parent=1 // pred_region
      %13 = vsyncadd [#allocation3], 0
      %s14 = sshll.u32 %s0, 4
      %s15 = int_to_ptr.hbm [resolvable:$true] %s14
      %s16 = sshll.u32 [#allocation2], 4
      %s17 = int_to_ptr.vmem [resolvable:$true] %s16
      %22 = dma.hbm_to_vmem [thread:$0]  %s15, 512, %s17, [#allocation3], 128, 128, 8
    $region5: #{tpu_custom_call.1} parent=1 // pred_fallthru
      _
    // Predicated region
    $region6: #{tpu_custom_call.1} parent=1 // pred_check
      _
    $region7: #{tpu_custom_call.1} parent=1 // pred_check_branch
      %24 = sbr.rel (0) target = $region9
    $region8: #{tpu_custom_call.1} parent=1 // pred_region
      _
    $region9: #{tpu_custom_call.1} parent=1 // pred_fallthru
      _
    // Predicated region
    $region10: #{tpu_custom_call.1} parent=1 // pred_check
      _
    $region11: #{tpu_custom_call.1} parent=1 // pred_check_branch
      %26 = sbr.rel (0) target = $region13
    $region12: #{tpu_custom_call.1} parent=1 // pred_region
      _
    $region13: #{tpu_custom_call.1} parent=1 // pred_fallthru
      _
    // Predicated region
    $region14: #{tpu_custom_call.1} parent=1 // pred_check
      _
    $region15: #{tpu_custom_call.1} parent=1 // pred_check_branch
      %28 = sbr.rel (0) target = $region17
    $region16: #{tpu_custom_call.1} parent=1 // pred_region
      %30 = dma.done [#allocation3], 512
    $region17: #{tpu_custom_call.1} parent=1 // pred_fallthru
      _
    %v31 = vld [vmem:[#allocation2] sm:$0xff]
    %v32 = vld [vmem:[#allocation2 + $0x8] sm:$0xff]
    %v33 = vld [vmem:[#allocation2 + $0x10] sm:$0xff]
    %v34 = vld [vmem:[#allocation2 + $0x18] sm:$0xff]
    %v35 = vld [vmem:[%s1] sm:$0xff]
    %v36 = vld [vmem:[%s1 + $0x8] sm:$0xff]
    %v37 = vld [vmem:[%s1 + $0x10] sm:$0xff]
    %v38 = vld [vmem:[%s1 + $0x18] sm:$0xff]
    %v39 = vld [vmem:[%s2] sm:$0xff]
    %v40 = vld [vmem:[%s2 + $0x8] sm:$0xff]
    %v41 = vld [vmem:[%s2 + $0x10] sm:$0xff]
    %v42 = vld [vmem:[%s2 + $0x18] sm:$0xff]
    %44 = vset.pattern.permute.xlu0 0
    %45 = vperm.xlu0 %44, %v39
    %v46 = vpop.permute.xlu0 %45
    %49 = vset.pattern.permute.xlu0 0
    %50 = vperm.xlu0 %49, %v40
    %v51 = vpop.permute.xlu0 %50
    %54 = vset.pattern.permute.xlu0 0
    %55 = vperm.xlu0 %54, %v41
    %v56 = vpop.permute.xlu0 %55
    %59 = vset.pattern.permute.xlu0 0
    %60 = vperm.xlu0 %59, %v42
    %v61 = vpop.permute.xlu0 %60
    %vm63 = vcmask 261120
    %v65 = vsel %vm63, %v35, 0
    %v68 = vsel %vm63, %v36, 0
    %v71 = vsel %vm63, %v37, 0
    %v74 = vsel %vm63, %v38, 0
    %76 = vmatpush.msra.mxu0 0.0
    %77 = vmatpush.msra.mxu0 0.0
    %78 = vmatpush.msra.mxu0 0.0
    %79 = vmatpush.msra.mxu0 0.0
    %80 = vmatpush.msra.mxu0 0.0
    %81 = vmatpush.msra.mxu0 0.0
    %82 = vmatpush.msra.mxu0 0.0
    %83 = vmatpush.msra.mxu0 0.0
    %84 = vmatpush.msra.mxu0 0.0
    %85 = vmatpush.msra.mxu0 0.0
    %86 = vmatpush.msra.mxu0 0.0
    %87 = vmatpush.msra.mxu0 0.0
    %88 = vmatpush.msra.mxu0 %v34
    %89 = vmatpush.msra.mxu0 %v33
    %90 = vmatpush.msra.mxu0 %v32
    %91 = vmatpush.msra.mxu0 %v31
    %92 = vmatmul.f32.gmra.mxu0 %v65
    %v93 = vpop.f32.mrf.mxu0
    %v94 = vadd.f32 %v46, %v93
    %95 = vmatmul.f32.gmra.mxu0 %v68
    %v96 = vpop.f32.mrf.mxu0
    %v97 = vadd.f32 %v51, %v96
    %98 = vmatmul.f32.gmra.mxu0 %v71
    %v99 = vpop.f32.mrf.mxu0
    %v100 = vadd.f32 %v56, %v99
    %101 = vmatmul.f32.gmra.mxu0 %v74
    %v102 = vpop.f32.mrf.mxu0
    %v103 = vadd.f32 %v61, %v102
    %104 = vdwg.mxu0
    %v105 = vtanh.pop %v94
    %v106 = vtanh.pop %v97
    %v107 = vtanh.pop %v100
    %v108 = vtanh.pop %v103
    %s109 = scalar_lea.vmem %s1, 32
    %v110 = vld [vmem:[%s109] sm:$0xff]
    %v111 = vld [vmem:[%s109 + $0x8] sm:$0xff]
    %v112 = vld [vmem:[%s109 + $0x10] sm:$0xff]
    %v113 = vld [vmem:[%s109 + $0x18] sm:$0xff]
    %s114 = scalar_lea.vmem %s2, 32
    %v115 = vld [vmem:[%s114] sm:$0xff]
    %v116 = vld [vmem:[%s114 + $0x8] sm:$0xff]
    %v117 = vld [vmem:[%s114 + $0x10] sm:$0xff]
    %v118 = vld [vmem:[%s114 + $0x18] sm:$0xff]
    %120 = vset.pattern.permute.xlu0 0
    %121 = vperm.xlu0 %120, %v115
    %v122 = vpop.permute.xlu0 %121
    %125 = vset.pattern.permute.xlu0 0
    %126 = vperm.xlu0 %125, %v116
    %v127 = vpop.permute.xlu0 %126
    %130 = vset.pattern.permute.xlu0 0
    %131 = vperm.xlu0 %130, %v117
    %v132 = vpop.permute.xlu0 %131
    %135 = vset.pattern.permute.xlu0 0
    %136 = vperm.xlu0 %135, %v118
    %v137 = vpop.permute.xlu0 %136
    %v140 = vsel %vm63, %v110, 0
    %v143 = vsel %vm63, %v111, 0
    %v146 = vsel %vm63, %v112, 0
    %v149 = vsel %vm63, %v113, 0
    %151 = vmatpush.msra.mxu0 0.0
    %152 = vmatpush.msra.mxu0 0.0
    %153 = vmatpush.msra.mxu0 0.0
    %154 = vmatpush.msra.mxu0 0.0
    %155 = vmatpush.msra.mxu0 0.0
    %156 = vmatpush.msra.mxu0 0.0
    %157 = vmatpush.msra.mxu0 0.0
    %158 = vmatpush.msra.mxu0 0.0
    %159 = vmatpush.msra.mxu0 0.0
    %160 = vmatpush.msra.mxu0 0.0
    %161 = vmatpush.msra.mxu0 0.0
    %162 = vmatpush.msra.mxu0 0.0
    %163 = vmatpush.msra.mxu0 %v108
    %164 = vmatpush.msra.mxu0 %v107
    %165 = vmatpush.msra.mxu0 %v106
    %166 = vmatpush.msra.mxu0 %v105
    %167 = vmatmul.f32.gmra.mxu0 %v140
    %v168 = vpop.f32.mrf.mxu0
    %v169 = vadd.f32 %v122, %v168
    %170 = vmatmul.f32.gmra.mxu0 %v143
    %v171 = vpop.f32.mrf.mxu0
    %v172 = vadd.f32 %v127, %v171
    %173 = vmatmul.f32.gmra.mxu0 %v146
    %v174 = vpop.f32.mrf.mxu0
    %v175 = vadd.f32 %v132, %v174
    %176 = vmatmul.f32.gmra.mxu0 %v149
    %v177 = vpop.f32.mrf.mxu0
    %v178 = vadd.f32 %v137, %v177
    %179 = vdwg.mxu0
    %v180 = vtanh.pop %v169
    %v181 = vtanh.pop %v172
    %v182 = vtanh.pop %v175
    %v183 = vtanh.pop %v178
    %s184 = scalar_lea.vmem %s1, 64
    %v185 = vld [vmem:[%s184] sm:$0xff]
    %v186 = vld [vmem:[%s184 + $0x8] sm:$0xff]
    %v187 = vld [vmem:[%s184 + $0x10] sm:$0xff]
    %v188 = vld [vmem:[%s184 + $0x18] sm:$0xff]
    %s189 = scalar_lea.vmem %s2, 64
    %v190 = vld [vmem:[%s189] sm:$0xff]
    %v191 = vld [vmem:[%s189 + $0x8] sm:$0xff]
    %v192 = vld [vmem:[%s189 + $0x10] sm:$0xff]
    %v193 = vld [vmem:[%s189 + $0x18] sm:$0xff]
    %195 = vset.pattern.permute.xlu0 0
    %196 = vperm.xlu0 %195, %v190
    %v197 = vpop.permute.xlu0 %196
    %200 = vset.pattern.permute.xlu0 0
    %201 = vperm.xlu0 %200, %v191
    %v202 = vpop.permute.xlu0 %201
    %204 = vset.pattern.permute.xlu0 0
    %205 = vperm.xlu0 %204, %v192
    %v206 = vpop.permute.xlu0 %205
    %208 = vset.pattern.permute.xlu0 0
    %209 = vperm.xlu0 %208, %v193
    %v210 = vpop.permute.xlu0 %209
    %v212 = vsel %vm63, %v185, 0
    %v215 = vsel %vm63, %v186, 0
    %v218 = vsel %vm63, %v187, 0
    %v221 = vsel %vm63, %v188, 0
    %223 = vmatpush.msra.mxu0 0.0
    %224 = vmatpush.msra.mxu0 0.0
    %225 = vmatpush.msra.mxu0 0.0
    %226 = vmatpush.msra.mxu0 0.0
    %227 = vmatpush.msra.mxu0 0.0
    %228 = vmatpush.msra.mxu0 0.0
    %229 = vmatpush.msra.mxu0 0.0
    %230 = vmatpush.msra.mxu0 0.0
    %231 = vmatpush.msra.mxu0 0.0
    %232 = vmatpush.msra.mxu0 0.0
    %233 = vmatpush.msra.mxu0 0.0
    %234 = vmatpush.msra.mxu0 0.0
    %235 = vmatpush.msra.mxu0 %v183
    %236 = vmatpush.msra.mxu0 %v182
    %237 = vmatpush.msra.mxu0 %v181
    %238 = vmatpush.msra.mxu0 %v180
    %239 = vmatmul.f32.gmra.mxu0 %v212
    %v240 = vpop.f32.mrf.mxu0
    %v241 = vadd.f32 %v197, %v240
    %242 = vmatmul.f32.gmra.mxu0 %v215
    %v243 = vpop.f32.mrf.mxu0
    %244 = vmatmul.f32.gmra.mxu0 %v218
    %v245 = vpop.f32.mrf.mxu0
    %246 = vmatmul.f32.gmra.mxu0 %v221
    %v247 = vpop.f32.mrf.mxu0
    %248 = vdwg.mxu0
    %249 = vst [vmem:[#allocation5] sm:$0x1] %v241
    // Predicated region
    $region18: #{tpu_custom_call.1} parent=1 // pred_check
      _
    $region19: #{tpu_custom_call.1} parent=1 // pred_check_branch
      %251 = sbr.rel (0) target = $region21
    $region20: #{tpu_custom_call.1} parent=1 // pred_region
      %253 = vsyncadd [#allocation4], 0
      %s255 = sshll.u32 [#allocation5], 4
      %s256 = int_to_ptr.vmem [resolvable:$true] %s255
      %s257 = sshll.u32 %s3, 4
      %s258 = int_to_ptr.hbm [resolvable:$true] %s257
      %260 = dma.vmem_to_hbm [thread:$0]  %s256, 16, %s258, [#allocation4]
    $region21: #{tpu_custom_call.1} parent=1 // pred_fallthru
      _
    // Predicated region
    $region22: #{tpu_custom_call.1} parent=1 // pred_check
      _
    $region23: #{tpu_custom_call.1} parent=1 // pred_check_branch
      %262 = sbr.rel (0) target = $region25
    $region24: #{tpu_custom_call.1} parent=1 // pred_region
      %264 = dma.done [#allocation4], 16
    $region25: #{tpu_custom_call.1} parent=1 // pred_fallthru
      _
    %265 = vsyncpa [#allocation3], 1
    %266 = vsyncpa [#allocation4], 1

</llo_original>
